<compile_context>
chip_gen: v7x
topology: tpu7x:2x2x1
jax: 0.10.0
libtpu: 0.0.40
codegen_flags: <defaults>
</compile_context>

<pallas_src>
import jax
import jax.numpy as jnp
from jax.experimental import pallas as pl
from jax.experimental.pallas import tpu as pltpu


_LANE = 128


def _round_up(x, m):
    return ((x + m - 1) // m) * m


def _sublane(dtype):
    # sublane packing granularity: 8 for 32-bit, 16 for bf16, 32 for int8
    return max(8, 32 // jnp.dtype(dtype).itemsize)


def _tpu_vmem_capacity_bytes():
    """Physical VMEM per TensorCore (defensive: fall back on device_kind)."""
    try:
        info = pltpu.get_tpu_info()
        cap = int(getattr(info, "vmem_capacity_bytes", 0) or 0)
        if cap > 0:
            return cap
    except Exception:
        pass
    kind = ""
    try:
        kind = jax.devices()[0].device_kind.lower()
    except Exception:
        pass
    if "v7" in kind:
        return 64 << 20       # v7x: 64 MiB per TC
    return 128 << 20          # v5e / v6e: 128 MiB


def _is_multi_tensorcore():
    # Only multi-TC parts (v7x) benefit from splitting a "parallel" grid axis.
    try:
        return "v7" in jax.devices()[0].device_kind.lower()
    except Exception:
        return False


# ----------------------------------------------------------------------------
# Kernels
# ----------------------------------------------------------------------------
def _n1_lane_dense_kernel(h_ref, p_ref, eh_ref, ep_ref, rel_ref, o_ref):
    # h:(bt,L2)  p:(bt,L1)  eh:(L2,N)  ep:(L1,N)  rel/o:(bt,N)  with N = L2*L1.
    # Expand the selectors onto the flattened lane axis with two tiny one-hot
    # matmuls (MXU is idle in this mem-bound kernel -> effectively free) and
    # multiply.  Output stores are full-lane (no vst.msk).
    h_exp = jnp.dot(h_ref[...].astype(jnp.float32), eh_ref[...],
                    preferred_element_type=jnp.float32)
    p_exp = jnp.dot(p_ref[...].astype(jnp.float32), ep_ref[...],
                    preferred_element_type=jnp.float32)
    o_ref[...] = (h_exp * p_exp * rel_ref[...].astype(jnp.float32)
                  ).astype(o_ref.dtype)


def _n1_bcast_kernel(h_ref, p_ref, rel_ref, o_ref):
    # h:(bt,L2,1)  p:(bt,1,L1)  rel/o:(bt,L2,L1).  Pure VPU broadcast multiply.
    h = h_ref[...].astype(jnp.float32)
    p = p_ref[...].astype(jnp.float32)
    o_ref[...] = (h * p * rel_ref[...].astype(jnp.float32)).astype(o_ref.dtype)


# ----------------------------------------------------------------------------
# Wrapper
# ----------------------------------------------------------------------------
def n1_forward(h_sel, p_sel, rel):
    """N1.forward:  d = (h_sel outer p_sel) * rel.

    h_sel: (B, L2) or (B, L2, 1)    p_sel: (B, L1) or (B, 1, L1)
    rel:   (B, L2, L1)              returns (B, L2, L1) with rel.dtype.
    Shapes must be static Python ints (block sizing happens at trace time).
    """
    B, L2, L1 = rel.shape
    h2 = h_sel.reshape(B, L2)
    p2 = p_sel.reshape(B, L1)
    out_dtype = rel.dtype
    N = L2 * L1

    isz_h = jnp.dtype(h2.dtype).itemsize
    isz_p = jnp.dtype(p2.dtype).itemsize
    isz_r = jnp.dtype(rel.dtype).itemsize
    isz_o = jnp.dtype(out_dtype).itemsize

    # Generation-aware VMEM budget (padded, double-buffered tiles are checked
    # against this, and the same value is handed to the compiler).
    vmem_cap = _tpu_vmem_capacity_bytes()
    scoped_limit = min(int(vmem_cap * 0.6), 100 << 20)   # ~76MiB v5e/v6e, ~38MiB v7x
    budget = int(scoped_limit * 0.8)                     # headroom for the compiler
    multi_tc = _is_multi_tensorcore()

    def lane_pad(c):
        return _round_up(c, _LANE)

    # ---------------- Path A: lane-dense flattened output ----------------
    # Worth it when L1 is not already a multiple of 128 and the one-hot
    # expansion matrices are small (short/medium sentences).
    eh_bytes = 2 * _round_up(L2, 8) * lane_pad(N) * 4     # double-buffered f32
    ep_bytes = 2 * _round_up(L1, 8) * lane_pad(N) * 4
    use_lane_dense = (L1 % _LANE != 0) and (eh_bytes + ep_bytes <= budget // 4)

    if use_lane_dense:
        sub = max(_sublane(d) for d in (h2.dtype, p2.dtype, rel.dtype, out_dtype))
        # Padded, double-buffered bytes added per extra batch row.
        per_row = 2 * (lane_pad(N) * isz_r + lane_pad(N) * isz_o
                       + lane_pad(L2) * isz_h + lane_pad(L1) * isz_p)
        bt = max(1, (budget - eh_bytes - ep_bytes) // per_row)
        if multi_tc and B > 1 and B * N * isz_r >= (2 << 20):
            bt = min(bt, pl.cdiv(B, 2))          # feed both v7x TensorCores
        bt = min(bt, B)
        if bt < B:
            bt = (bt // sub) * sub               # (8,128) rule on second-minor dim
        if bt >= 1:
            k = jnp.arange(N, dtype=jnp.int32)
            eh = (k[None, :] // L1 ==
                  jnp.arange(L2, dtype=jnp.int32)[:, None]).astype(jnp.float32)
            ep = (k[None, :] % L1 ==
                  jnp.arange(L1, dtype=jnp.int32)[:, None]).astype(jnp.float32)
            rel_flat = rel.reshape(B, N)         # contiguous -> free reshape
            out_flat = pl.pallas_call(
                _n1_lane_dense_kernel,
                out_shape=jax.ShapeDtypeStruct((B, N), out_dtype),
                grid_spec=pltpu.PrefetchScalarGridSpec(
                    num_scalar_prefetch=0,
                    grid=(pl.cdiv(B, bt),),
                    in_specs=[
                        pl.BlockSpec((bt, L2), lambda b: (b, 0)),
                        pl.BlockSpec((bt, L1), lambda b: (b, 0)),
                        pl.BlockSpec((L2, N), lambda b: (0, 0)),
                        pl.BlockSpec((L1, N), lambda b: (0, 0)),
                        pl.BlockSpec((bt, N), lambda b: (b, 0)),
                    ],
                    out_specs=pl.BlockSpec((bt, N), lambda b: (b, 0)),
                ),
                compiler_params=pltpu.CompilerParams(
                    dimension_semantics=("parallel",),
                    vmem_limit_bytes=scoped_limit,
                ),
            )(h2, p2, eh, ep, rel_flat)
            return out_flat.reshape(B, L2, L1)

    # ---------------- Path B: 3-D broadcast fallback ----------------
    # Used when L1 is already lane-dense (multiple of 128) or sentences are too
    # long for the one-hot expansion.  Padded-byte-aware batch blocking.
    sub_r, sub_o = _sublane(rel.dtype), _sublane(out_dtype)
    sub_h, sub_p = _sublane(h2.dtype), _sublane(p2.dtype)
    per_row = 2 * (_round_up(L2, sub_r) * lane_pad(L1) * isz_r
                   + _round_up(L2, sub_o) * lane_pad(L1) * isz_o
                   + _round_up(L2, sub_h) * lane_pad(1) * isz_h
                   + _round_up(1, sub_p) * lane_pad(L1) * isz_p)
    bt = max(1, budget // per_row)
    if multi_tc and B > 1 and B * L2 * L1 * isz_r >= (2 << 20):
        bt = min(bt, pl.cdiv(B, 2))
    bt = min(bt, B)
    # TODO(synk): if a single batch row exceeds the VMEM budget (very long
    # sentences) this still uses bt=1; tiling within (L2, L1) would be needed.
    h3 = h2.reshape(B, L2, 1)
    p3 = p2.reshape(B, 1, L1)
    return pl.pallas_call(
        _n1_bcast_kernel,
        out_shape=jax.ShapeDtypeStruct((B, L2, L1), out_dtype),
        grid_spec=pltpu.PrefetchScalarGridSpec(
            num_scalar_prefetch=0,
            grid=(pl.cdiv(B, bt),),
            in_specs=[
                pl.BlockSpec((bt, L2, 1), lambda b: (b, 0, 0)),
                pl.BlockSpec((bt, 1, L1), lambda b: (b, 0, 0)),
                pl.BlockSpec((bt, L2, L1), lambda b: (b, 0, 0)),
            ],
            out_specs=pl.BlockSpec((bt, L2, L1), lambda b: (b, 0, 0)),
        ),
        compiler_params=pltpu.CompilerParams(
            dimension_semantics=("parallel",),
            vmem_limit_bytes=scoped_limit,
        ),
    )(h3, p3, rel)


if __name__ == "__main__":
    # Small shapes consistent with the module: batch_l=2, sent_l2=8, sent_l1=16
    B, L2, L1 = 2, 8, 16
    key = jax.random.PRNGKey(0)
    k_h, k_p, k_r = jax.random.split(key, 3)

    # Binary content-word selectors (0/1 floats), as produced by get_*_selector
    h_sel = (jax.random.uniform(k_h, (B, L2)) < 0.7).astype(jnp.float32)
    h_sel = h_sel.reshape(B, L2, 1)
    p_sel = (jax.random.uniform(k_p, (B, L1)) < 0.7).astype(jnp.float32)
    p_sel = p_sel.reshape(B, 1, L1)
    # Relation selector R ('all_rel'), binary mask over (L2, L1) pairs
    rel = (jax.random.uniform(k_r, (B, L2, L1)) < 0.5).astype(jnp.float32)

    out = n1_forward(h_sel, p_sel, rel)
    out = jax.block_until_ready(out)

    # Reference check in plain JAX (same broadcast semantics as PyTorch)
    ref = (h_sel * p_sel) * rel
    assert out.shape == (B, L2, L1)
    assert jnp.allclose(out, ref), "mismatch vs reference"

    print("KERNEL_OK")
</pallas_src>

<mosaic_0001>
module attributes {stable_mosaic.version = 11 : i64} {
  func.func @_n1_lane_dense_kernel(%arg0: i32, %arg1: memref<2x8xf32, #tpu.memory_space<vmem>>, %arg2: memref<2x16xf32, #tpu.memory_space<vmem>>, %arg3: memref<8x128xf32, #tpu.memory_space<vmem>>, %arg4: memref<16x128xf32, #tpu.memory_space<vmem>>, %arg5: memref<2x128xf32, #tpu.memory_space<vmem>>, %arg6: memref<2x128xf32, #tpu.memory_space<vmem>>) attributes {dimension_semantics = [#tpu.dimension_semantics<parallel>], iteration_bounds = array<i64: 1>, scalar_prefetch = 0 : i64, scratch_operands = 0 : i64, tpu.core_type = #tpu.core_type<tc>, window_params = [{transform_indices = @transform_0, window_bounds = array<i64: 2, 8>}, {transform_indices = @transform_1, window_bounds = array<i64: 2, 16>}, {pipeline_mode = #tpu.pipeline_mode<synchronous>, transform_indices = @transform_2, window_bounds = array<i64: 8, 128>}, {pipeline_mode = #tpu.pipeline_mode<synchronous>, transform_indices = @transform_3, window_bounds = array<i64: 16, 128>}, {transform_indices = @transform_4, window_bounds = array<i64: 2, 128>}, {transform_indices = @transform_5, window_bounds = array<i64: 2, 128>}]} {
    %c0 = arith.constant 0 : index
    %c0_0 = arith.constant 0 : index
    %0 = vector.load %arg1[%c0, %c0_0] : memref<2x8xf32, #tpu.memory_space<vmem>>, vector<2x8xf32>
    %c0_1 = arith.constant 0 : index
    %c0_2 = arith.constant 0 : index
    %1 = vector.load %arg3[%c0_1, %c0_2] : memref<8x128xf32, #tpu.memory_space<vmem>>, vector<8x128xf32>
    %cst = arith.constant dense<0.000000e+00> : vector<2x128xf32>
    %2 = tpu.matmul %0, %1, %cst {dimension_numbers = #tpu.dot_dimension_numbers<[1], [0], [0], [1], [0, 0, 1, 1], [], []>} : vector<2x8xf32>, vector<8x128xf32>, vector<2x128xf32> -> vector<2x128xf32>
    %c0_3 = arith.constant 0 : index
    %c0_4 = arith.constant 0 : index
    %3 = vector.load %arg2[%c0_3, %c0_4] : memref<2x16xf32, #tpu.memory_space<vmem>>, vector<2x16xf32>
    %c0_5 = arith.constant 0 : index
    %c0_6 = arith.constant 0 : index
    %4 = vector.load %arg4[%c0_5, %c0_6] : memref<16x128xf32, #tpu.memory_space<vmem>>, vector<16x128xf32>
    %cst_7 = arith.constant dense<0.000000e+00> : vector<2x128xf32>
    %5 = tpu.matmul %3, %4, %cst_7 {dimension_numbers = #tpu.dot_dimension_numbers<[1], [0], [0], [1], [0, 0, 1, 1], [], []>} : vector<2x16xf32>, vector<16x128xf32>, vector<2x128xf32> -> vector<2x128xf32>
    %6 = arith.mulf %2, %5 : vector<2x128xf32>
    %c0_8 = arith.constant 0 : index
    %c0_9 = arith.constant 0 : index
    %7 = vector.load %arg5[%c0_8, %c0_9] : memref<2x128xf32, #tpu.memory_space<vmem>>, vector<2x128xf32>
    %8 = arith.mulf %6, %7 : vector<2x128xf32>
    %c0_10 = arith.constant 0 : index
    %c0_11 = arith.constant 0 : index
    %9 = vector.load %arg6[%c0_10, %c0_11] : memref<2x128xf32, #tpu.memory_space<vmem>>, vector<2x128xf32>
    tpu.vector_store %arg6[%c0_10, %c0_11], %8 {strides = array<i32>} : memref<2x128xf32, #tpu.memory_space<vmem>>, vector<2x128xf32>,
    return
  }
  func.func @transform_0(%arg0: i32) -> (i32, i32) {
    %c0_i32 = arith.constant 0 : i32
    %c0_i32_0 = arith.constant 0 : i32
    return %arg0, %c0_i32 : i32, i32
  }
  func.func @transform_1(%arg0: i32) -> (i32, i32) {
    %c0_i32 = arith.constant 0 : i32
    %c0_i32_0 = arith.constant 0 : i32
    return %arg0, %c0_i32 : i32, i32
  }
  func.func @transform_2(%arg0: i32) -> (i32, i32) {
    %c0_i32 = arith.constant 0 : i32
    %c0_i32_0 = arith.constant 0 : i32
    %c0_i32_1 = arith.constant 0 : i32
    return %c0_i32, %c0_i32_0 : i32, i32
  }
  func.func @transform_3(%arg0: i32) -> (i32, i32) {
    %c0_i32 = arith.constant 0 : i32
    %c0_i32_0 = arith.constant 0 : i32
    %c0_i32_1 = arith.constant 0 : i32
    return %c0_i32, %c0_i32_0 : i32, i32
  }
  func.func @transform_4(%arg0: i32) -> (i32, i32) {
    %c0_i32 = arith.constant 0 : i32
    %c0_i32_0 = arith.constant 0 : i32
    return %arg0, %c0_i32 : i32, i32
  }
  func.func @transform_5(%arg0: i32) -> (i32, i32) {
    %c0_i32 = arith.constant 0 : i32
    %c0_i32_0 = arith.constant 0 : i32
    return %arg0, %c0_i32 : i32, i32
  }
}

</mosaic_0001>

<llo_original>
// kernel: tpu_custom_call.1
$region0: #{tpu_custom_call.1}
  #allocation0 [shape = 'u32[]', space=smem, size = 0x4, offset = 0x4, fixed_abs, tag = 'smem constant byte address 0x4 - core index']
  #allocation1 [shape = 'u32[144,128]{1,0:T(1,128)}', space=vmem, size = 0x12000, scoped, tag = 'internal scratch']
  %s0 = inlined_call_operand.hbm [shape: f32[2,8], index: 0, kind: input, shape index: {}]
  %s1 = inlined_call_operand.hbm [shape: f32[2,16], index: 1, kind: input, shape index: {}]
  %s2 = inlined_call_operand.hbm [shape: f32[8,128], index: 2, kind: input, shape index: {}]
  %s3 = inlined_call_operand.hbm [shape: f32[16,128], index: 3, kind: input, shape index: {}]
  %s4 = inlined_call_operand.hbm [shape: f32[2,128], index: 4, kind: input, shape index: {}]
  %s5 = inlined_call_operand.hbm [shape: f32[2,128], index: 5, kind: output, shape index: {}]
  %s6 = sld [smem:[#allocation0]]
  $region50: #{tpu_custom_call.1} parent=0
    _
  %s8 = ssub.s32 1, %s6
  %s9 = scalar_select 0, %s8, %s6
  $region1: #{tpu_custom_call.1} parent=0
    #allocation2 [shape = 'u8[1024]{0}', space=vmem, size = 0x400, scoped, tag = 'input window, operand 0, single buffered']
    #allocation3 [shape = 's32[1]{0}', space=sflag, size = 0x4, scoped, tag = 'scoped memory for tpu_custom_call.1']
    #allocation4 [shape = 's32[1]{0}', space=sflag, size = 0x4, scoped, tag = 'scoped memory for tpu_custom_call.1']
    #allocation5 [shape = 'u8[1024]{0}', space=vmem, size = 0x400, scoped, tag = 'input window, operand 1, single buffered']
    #allocation6 [shape = 's32[1]{0}', space=sflag, size = 0x4, scoped, tag = 'scoped memory for tpu_custom_call.1']
    #allocation7 [shape = 'u8[4096]{0}', space=vmem, size = 0x1000, scoped, tag = 'input window, operand 2, single buffered']
    #allocation8 [shape = 'u8[8192]{0}', space=vmem, size = 0x2000, scoped, tag = 'input window, operand 3, single buffered']
    #allocation9 [shape = 's32[1]{0}', space=sflag, size = 0x4, scoped, tag = 'scoped memory for tpu_custom_call.1']
    #allocation10 [shape = 'u8[1024]{0}', space=vmem, size = 0x400, scoped, tag = 'input window, operand 4, single buffered']
    #allocation11 [shape = 'u8[1024]{0}', space=vmem, size = 0x400, scoped, tag = 'output window, operand 0, single buffered']
    %10 = vsyncpa [#allocation3], 0
    %11 = vsyncpa [#allocation6], 0
    %12 = vsyncpa [#allocation9], 0
    %13 = vsyncpa [#allocation4], 0
    // Predicated region
    $region2: #{tpu_custom_call.1} parent=1 // pred_check
      _
    $region3: #{tpu_custom_call.1} parent=1 // pred_check_branch
      %15 = sbr.rel (0) target = $region5
    $region4: #{tpu_custom_call.1} parent=1 // pred_region
      %s17 = ssub.s32 32, 32
      %18 = vsyncadd [#allocation3], %s17
      %s20 = sshll.u32 [#allocation2], 4
      %s21 = int_to_ptr.vmem [resolvable:$true] %s20
      %23 = dma.hbm_to_vmem [thread:$0]  %s0, 32, %s21, [#allocation3]
    $region5: #{tpu_custom_call.1} parent=1 // pred_fallthru
      _
    // Predicated region
    $region6: #{tpu_custom_call.1} parent=1 // pred_check
      _
    $region7: #{tpu_custom_call.1} parent=1 // pred_check_branch
      %25 = sbr.rel (0) target = $region9
    $region8: #{tpu_custom_call.1} parent=1 // pred_region
      %s27 = ssub.s32 32, 32
      %28 = vsyncadd [#allocation6], %s27
      %s30 = sshll.u32 [#allocation5], 4
      %s31 = int_to_ptr.vmem [resolvable:$true] %s30
      %33 = dma.hbm_to_vmem [thread:$0]  %s1, 32, %s31, [#allocation6]
    $region9: #{tpu_custom_call.1} parent=1 // pred_fallthru
      _
    // Predicated region
    $region10: #{tpu_custom_call.1} parent=1 // pred_check
      _
    $region11: #{tpu_custom_call.1} parent=1 // pred_check_branch
      %35 = sbr.rel (0) target = $region13
    $region12: #{tpu_custom_call.1} parent=1 // pred_region
      %s37 = ssub.s32 128, 128
      %38 = vsyncadd [#allocation6], %s37
      %s40 = sshll.u32 [#allocation7], 4
      %s41 = int_to_ptr.vmem [resolvable:$true] %s40
      %43 = dma.hbm_to_vmem [thread:$0]  %s2, 128, %s41, [#allocation6]
    $region13: #{tpu_custom_call.1} parent=1 // pred_fallthru
      _
    // Predicated region
    $region14: #{tpu_custom_call.1} parent=1 // pred_check
      _
    $region15: #{tpu_custom_call.1} parent=1 // pred_check_branch
      %45 = sbr.rel (0) target = $region17
    $region16: #{tpu_custom_call.1} parent=1 // pred_region
      %s47 = ssub.s32 256, 256
      %48 = vsyncadd [#allocation9], %s47
      %s49 = sshll.u32 [#allocation8], 4
      %s50 = int_to_ptr.vmem [resolvable:$true] %s49
      %55 = dma.hbm_to_vmem [thread:$0]  %s3, 256, %s50, [#allocation9], 128, 128, 8
    $region17: #{tpu_custom_call.1} parent=1 // pred_fallthru
      _
    // Predicated region
    $region18: #{tpu_custom_call.1} parent=1 // pred_check
      _
    $region19: #{tpu_custom_call.1} parent=1 // pred_check_branch
      %57 = sbr.rel (0) target = $region21
    $region20: #{tpu_custom_call.1} parent=1 // pred_region
      %s59 = ssub.s32 32, 32
      %60 = vsyncadd [#allocation9], %s59
      %s62 = sshll.u32 [#allocation10], 4
      %s63 = int_to_ptr.vmem [resolvable:$true] %s62
      %65 = dma.hbm_to_vmem [thread:$0]  %s4, 32, %s63, [#allocation9]
    $region21: #{tpu_custom_call.1} parent=1 // pred_fallthru
      _
    // Predicated region
    $region22: #{tpu_custom_call.1} parent=1 // pred_check
      _
    $region23: #{tpu_custom_call.1} parent=1 // pred_check_branch
      %67 = sbr.rel (0) target = $region25
    $region24: #{tpu_custom_call.1} parent=1 // pred_region
      %68 = dma.done [#allocation3], 32
    $region25: #{tpu_custom_call.1} parent=1 // pred_fallthru
      _
    // Predicated region
    $region26: #{tpu_custom_call.1} parent=1 // pred_check
      _
    $region27: #{tpu_custom_call.1} parent=1 // pred_check_branch
      %70 = sbr.rel (0) target = $region29
    $region28: #{tpu_custom_call.1} parent=1 // pred_region
      %71 = dma.done [#allocation6], 32
    $region29: #{tpu_custom_call.1} parent=1 // pred_fallthru
      _
    // Predicated region
    $region30: #{tpu_custom_call.1} parent=1 // pred_check
      _
    $region31: #{tpu_custom_call.1} parent=1 // pred_check_branch
      %73 = sbr.rel (0) target = $region33
    $region32: #{tpu_custom_call.1} parent=1 // pred_region
      %74 = dma.done [#allocation6], 128
    $region33: #{tpu_custom_call.1} parent=1 // pred_fallthru
      _
    // Predicated region
    $region34: #{tpu_custom_call.1} parent=1 // pred_check
      _
    $region35: #{tpu_custom_call.1} parent=1 // pred_check_branch
      %76 = sbr.rel (0) target = $region37
    $region36: #{tpu_custom_call.1} parent=1 // pred_region
      %77 = dma.done [#allocation9], 256
    $region37: #{tpu_custom_call.1} parent=1 // pred_fallthru
      _
    // Predicated region
    $region38: #{tpu_custom_call.1} parent=1 // pred_check
      _
    $region39: #{tpu_custom_call.1} parent=1 // pred_check_branch
      %79 = sbr.rel (0) target = $region41
    $region40: #{tpu_custom_call.1} parent=1 // pred_region
      %80 = dma.done [#allocation9], 32
    $region41: #{tpu_custom_call.1} parent=1 // pred_fallthru
      _
    %v81 = vld [vmem:[#allocation2] sm:$0x3]
    %v82 = vld [vmem:[#allocation7] sm:$0xff]
    %vm83 = vcmask 64512
    %v85 = vsel %vm83, %v81, 0
    %87 = vmatprep.subr.mxu0 0.0
    %88 = vmatpush1.msra.mxu0 %v82
    %89 = vmatprep.subr.mxu0 0.0
    %90 = vmatpush1.msra.mxu0 0.0
    %91 = vmatprep.subr.mxu0 0.0
    %92 = vmatpush1.msra.mxu0 0.0
    %93 = vmatprep.subr.mxu0 0.0
    %94 = vmatpush1.msra.mxu0 0.0
    %95 = vmatprep.subr.mxu0 0.0
    %96 = vmatpush1.msra.mxu0 0.0
    %97 = vmatprep.subr.mxu0 0.0
    %98 = vmatpush1.msra.mxu0 0.0
    %99 = vmatprep.subr.mxu0 0.0
    %100 = vmatpush1.msra.mxu0 0.0
    %101 = vmatprep.subr.mxu0 0.0
    %102 = vmatpush1.msra.mxu0 0.0
    %103 = vmatprep.subr.mxu0 0.0
    %104 = vmatpush1.msra.mxu0 0.0
    %105 = vmatprep.subr.mxu0 0.0
    %106 = vmatpush1.msra.mxu0 0.0
    %107 = vmatprep.subr.mxu0 0.0
    %108 = vmatpush1.msra.mxu0 0.0
    %109 = vmatprep.subr.mxu0 0.0
    %110 = vmatpush1.msra.mxu0 0.0
    %111 = vmatprep.subr.mxu0 0.0
    %112 = vmatpush1.msra.mxu0 0.0
    %113 = vmatprep.subr.mxu0 0.0
    %114 = vmatpush1.msra.mxu0 0.0
    %115 = vmatprep.subr.mxu0 0.0
    %116 = vmatpush1.msra.mxu0 0.0
    %117 = vmatprep.subr.mxu0 0.0
    %118 = vmatpush1.msra.mxu0 0.0
    %119 = vmatprep.subr.mxu0 0.0
    %120 = vmatpush1.msra.mxu0 0.0
    %121 = vmatprep.subr.mxu0 0.0
    %122 = vmatpush1.msra.mxu0 0.0
    %123 = vmatprep.subr.mxu0 0.0
    %124 = vmatpush1.msra.mxu0 0.0
    %125 = vmatprep.subr.mxu0 0.0
    %126 = vmatpush1.msra.mxu0 0.0
    %127 = vmatprep.subr.mxu0 0.0
    %128 = vmatpush1.msra.mxu0 0.0
    %129 = vmatprep.subr.mxu0 0.0
    %130 = vmatpush1.msra.mxu0 0.0
    %131 = vmatprep.subr.mxu0 0.0
    %132 = vmatpush1.msra.mxu0 0.0
    %133 = vmatprep.subr.mxu0 0.0
    %134 = vmatpush1.msra.mxu0 0.0
    %135 = vmatprep.subr.mxu0 0.0
    %136 = vmatpush1.msra.mxu0 0.0
    %137 = vmatprep.subr.mxu0 0.0
    %138 = vmatpush1.msra.mxu0 0.0
    %139 = vmatprep.subr.mxu0 0.0
    %140 = vmatpush1.msra.mxu0 0.0
    %141 = vmatprep.subr.mxu0 0.0
    %142 = vmatpush1.msra.mxu0 0.0
    %143 = vmatprep.subr.mxu0 0.0
    %144 = vmatpush1.msra.mxu0 0.0
    %145 = vmatprep.subr.mxu0 0.0
    %146 = vmatpush1.msra.mxu0 0.0
    %147 = vmatprep.subr.mxu0 0.0
    %148 = vmatpush1.msra.mxu0 0.0
    %149 = vmatprep.subr.mxu0 0.0
    %150 = vmatpush1.msra.mxu0 0.0
    %151 = vmatprep.mubr.f32.mxu0 0.0
    %152 = vmatmul.mubr.f32.gmra.mrb[0].mxu0 %v85
    %v153 = vpop.f32.mrb[0].mxu0
    %v154 = vadd.f32 0.0, %v153
    %v155 = vpop.f32.mrb[0].mxu0
    %156 = vdwg.mxu0
    %v157 = vld [vmem:[#allocation5] sm:$0x3]
    %v158 = vld [vmem:[#allocation8] sm:$0xff]
    %v159 = vld [vmem:[#allocation8 + $0x8] sm:$0xff]
    %vm160 = vcmask 130048
    %v162 = vsel %vm160, %v157, 0
    %164 = vmatprep.subr.mxu0 0.0
    %165 = vmatpush1.msra.mxu0 %v158
    %166 = vmatprep.subr.mxu0 0.0
    %167 = vmatpush1.msra.mxu0 %v159
    %168 = vmatprep.subr.mxu0 0.0
    %169 = vmatpush1.msra.mxu0 0.0
    %170 = vmatprep.subr.mxu0 0.0
    %171 = vmatpush1.msra.mxu0 0.0
    %172 = vmatprep.subr.mxu0 0.0
    %173 = vmatpush1.msra.mxu0 0.0
    %174 = vmatprep.subr.mxu0 0.0
    %175 = vmatpush1.msra.mxu0 0.0
    %176 = vmatprep.subr.mxu0 0.0
    %177 = vmatpush1.msra.mxu0 0.0
    %178 = vmatprep.subr.mxu0 0.0
    %179 = vmatpush1.msra.mxu0 0.0
    %180 = vmatprep.subr.mxu0 0.0
    %181 = vmatpush1.msra.mxu0 0.0
    %182 = vmatprep.subr.mxu0 0.0
    %183 = vmatpush1.msra.mxu0 0.0
    %184 = vmatprep.subr.mxu0 0.0
    %185 = vmatpush1.msra.mxu0 0.0
    %186 = vmatprep.subr.mxu0 0.0
    %187 = vmatpush1.msra.mxu0 0.0
    %188 = vmatprep.subr.mxu0 0.0
    %189 = vmatpush1.msra.mxu0 0.0
    %190 = vmatprep.subr.mxu0 0.0
    %191 = vmatpush1.msra.mxu0 0.0
    %192 = vmatprep.subr.mxu0 0.0
    %193 = vmatpush1.msra.mxu0 0.0
    %194 = vmatprep.subr.mxu0 0.0
    %195 = vmatpush1.msra.mxu0 0.0
    %196 = vmatprep.subr.mxu0 0.0
    %197 = vmatpush1.msra.mxu0 0.0
    %198 = vmatprep.subr.mxu0 0.0
    %199 = vmatpush1.msra.mxu0 0.0
    %200 = vmatprep.subr.mxu0 0.0
    %201 = vmatpush1.msra.mxu0 0.0
    %202 = vmatprep.subr.mxu0 0.0
    %203 = vmatpush1.msra.mxu0 0.0
    %204 = vmatprep.subr.mxu0 0.0
    %205 = vmatpush1.msra.mxu0 0.0
    %206 = vmatprep.subr.mxu0 0.0
    %207 = vmatpush1.msra.mxu0 0.0
    %208 = vmatprep.subr.mxu0 0.0
    %209 = vmatpush1.msra.mxu0 0.0
    %210 = vmatprep.subr.mxu0 0.0
    %211 = vmatpush1.msra.mxu0 0.0
    %212 = vmatprep.subr.mxu0 0.0
    %213 = vmatpush1.msra.mxu0 0.0
    %214 = vmatprep.subr.mxu0 0.0
    %215 = vmatpush1.msra.mxu0 0.0
    %216 = vmatprep.subr.mxu0 0.0
    %217 = vmatpush1.msra.mxu0 0.0
    %218 = vmatprep.subr.mxu0 0.0
    %219 = vmatpush1.msra.mxu0 0.0
    %220 = vmatprep.subr.mxu0 0.0
    %221 = vmatpush1.msra.mxu0 0.0
    %222 = vmatprep.subr.mxu0 0.0
    %223 = vmatpush1.msra.mxu0 0.0
    %224 = vmatprep.subr.mxu0 0.0
    %225 = vmatpush1.msra.mxu0 0.0
    %226 = vmatprep.subr.mxu0 0.0
    %227 = vmatpush1.msra.mxu0 0.0
    %228 = vmatprep.mubr.f32.mxu0 0.0
    %229 = vmatmul.mubr.f32.gmra.mrb[0].mxu0 %v162
    %v230 = vpop.f32.mrb[0].mxu0
    %v231 = vadd.f32 0.0, %v230
    %v232 = vpop.f32.mrb[0].mxu0
    %233 = vdwg.mxu0
    %v234 = vmul.f32 %v154, %v231
    %v235 = vld [vmem:[#allocation10] sm:$0x3]
    %v236 = vmul.f32 %v234, %v235
    %237 = vst [vmem:[#allocation11] sm:$0x3] %v236
    // Predicated region
    $region42: #{tpu_custom_call.1} parent=1 // pred_check
      _
    $region43: #{tpu_custom_call.1} parent=1 // pred_check_branch
      %239 = sbr.rel (0) target = $region45
    $region44: #{tpu_custom_call.1} parent=1 // pred_region
      %s241 = ssub.s32 32, 32
      %242 = vsyncadd [#allocation4], %s241
      %s244 = sshll.u32 [#allocation11], 4
      %s245 = int_to_ptr.vmem [resolvable:$true] %s244
      %247 = dma.vmem_to_hbm [thread:$0]  %s245, 32, %s5, [#allocation4]
    $region45: #{tpu_custom_call.1} parent=1 // pred_fallthru
      _
    // Predicated region
    $region46: #{tpu_custom_call.1} parent=1 // pred_check
      _
    $region47: #{tpu_custom_call.1} parent=1 // pred_check_branch
      %249 = sbr.rel (0) target = $region49
    $region48: #{tpu_custom_call.1} parent=1 // pred_region
      %250 = dma.done [#allocation4], 32
    $region49: #{tpu_custom_call.1} parent=1 // pred_fallthru
      _
    %251 = vsyncpa [#allocation3], 1
    %252 = vsyncpa [#allocation6], 1
    %253 = vsyncpa [#allocation9], 1
    %254 = vsyncpa [#allocation4], 1

</llo_original>
